<compile_context>
chip_gen: v7x
topology: tpu7x:2x2x1
jax: 0.10.0
libtpu: 0.0.40
codegen_flags: <defaults>
</compile_context>

<pallas_src>
import functools

import jax
import jax.numpy as jnp
from jax.experimental import pallas as pl
from jax.experimental.pallas import tpu as pltpu


# ----------------------------------------------------------------------------
# Helpers
# ----------------------------------------------------------------------------
def _round_up(n, m):
    return ((n + m - 1) // m) * m


def _full_spec(a):
    # Whole-array single block (shapes here are tiny; everything fits VMEM).
    return pl.BlockSpec(a.shape, lambda: (0,) * a.ndim)


# ----------------------------------------------------------------------------
# Kernel math (shared by the per-step and the fused-sequence kernels)
# ----------------------------------------------------------------------------
def _lstm_gate_math(xr, h, c, w_in, w_h, b, H):
    """One LSTMCell step.

    Weights are packed with gate order (i, f, o, g) so a single sigmoid runs
    over the contiguous first 3H columns and tanh only over the last H.
    `xr` is the concatenated [input_data, prev_reads] row block, so the gates
    are exactly two MXU dots (input + recurrence).
    """
    gates = (jnp.dot(xr, w_in, preferred_element_type=jnp.float32)
             + jnp.dot(h, w_h, preferred_element_type=jnp.float32)
             + b)                                    # (B, Gp)
    sig = jax.nn.sigmoid(gates[:, :3 * H])           # (i, f, o) in one EUP slab
    g_g = jnp.tanh(gates[:, 3 * H:4 * H])
    i_g = sig[:, 0 * H:1 * H]
    f_g = sig[:, 1 * H:2 * H]
    o_g = sig[:, 2 * H:3 * H]
    c_new = f_g * c + i_g * g_g
    h_new = o_g * jnp.tanh(c_new)
    return h_new, c_new


def _output_math(h, rd, w_oh, w_or, b_o):
    """sigmoid( [h, read] @ W_out + b ) as split-K dots (no concat with h)."""
    return jax.nn.sigmoid(
        jnp.dot(h, w_oh, preferred_element_type=jnp.float32)
        + jnp.dot(rd, w_or, preferred_element_type=jnp.float32)
        + b_o)


# ----------------------------------------------------------------------------
# Kernels
# ----------------------------------------------------------------------------
def _lstm_step_kernel(xr_ref, h_ref, c_ref, w_in_ref, w_h_ref, b_ref,
                      h_out_ref, c_out_ref):
    H = h_ref.shape[1]
    h_new, c_new = _lstm_gate_math(xr_ref[...], h_ref[...], c_ref[...],
                                   w_in_ref[...], w_h_ref[...], b_ref[...], H)
    h_out_ref[...] = h_new
    c_out_ref[...] = c_new


def _output_head_kernel(h_ref, rd_ref, w_oh_ref, w_or_ref, b_o_ref, o_ref):
    o_ref[...] = _output_math(h_ref[...], rd_ref[...], w_oh_ref[...],
                              w_or_ref[...], b_o_ref[...])


def _fused_step_kernel(xr_ref, rd_ref, h_ref, c_ref,
                       w_in_ref, w_h_ref, b_ref,
                       w_oh_ref, w_or_ref, b_o_ref,
                       h_out_ref, c_out_ref, o_ref):
    """LSTM cell update + output head in one pallas_call (single step)."""
    H = h_ref.shape[1]
    h_new, c_new = _lstm_gate_math(xr_ref[...], h_ref[...], c_ref[...],
                                   w_in_ref[...], w_h_ref[...], b_ref[...], H)
    h_out_ref[...] = h_new
    c_out_ref[...] = c_new
    o_ref[...] = _output_math(h_new, rd_ref[...], w_oh_ref[...],
                              w_or_ref[...], b_o_ref[...])


def _sequence_kernel(xr_ref, rd_ref, h0_ref, c0_ref,
                     w_in_ref, w_h_ref, b_ref,
                     w_oh_ref, w_or_ref, b_o_ref,
                     h_ref, c_ref, out_ref):
    """grid=(T,): full controller recurrence with VMEM-resident weights.

    h_ref / c_ref are resident output blocks (constant index_map) that carry
    the recurrent state across grid steps; xr/rd/out stream over T.
    """
    t = pl.program_id(0)
    H = h_ref.shape[1]

    @pl.when(t == 0)
    def _():
        h_ref[...] = h0_ref[...]
        c_ref[...] = c0_ref[...]

    h_new, c_new = _lstm_gate_math(xr_ref[...], h_ref[...], c_ref[...],
                                   w_in_ref[...], w_h_ref[...], b_ref[...], H)
    h_ref[...] = h_new
    c_ref[...] = c_new
    out_ref[...] = _output_math(h_new, rd_ref[...], w_oh_ref[...],
                                w_or_ref[...], b_o_ref[...])


# ----------------------------------------------------------------------------
# pallas_call wrappers (everything fits VMEM at these shapes)
# ----------------------------------------------------------------------------
@jax.jit
def lstm_forward_step(xr, h, c, w_in, w_h, b):
    Bp, H = h.shape
    return pl.pallas_call(
        _lstm_step_kernel,
        out_shape=(jax.ShapeDtypeStruct((Bp, H), jnp.float32),
                   jax.ShapeDtypeStruct((Bp, H), jnp.float32)),
        in_specs=[_full_spec(a) for a in (xr, h, c, w_in, w_h, b)],
        out_specs=(pl.BlockSpec((Bp, H), lambda: (0, 0)),
                   pl.BlockSpec((Bp, H), lambda: (0, 0))),
        input_output_aliases={1: 0, 2: 1},   # h, c updated in place
    )(xr, h, c, w_in, w_h, b)


@jax.jit
def output_head_step(h, rd, w_oh, w_or, b_o):
    Bp = h.shape[0]
    Op = w_oh.shape[1]
    return pl.pallas_call(
        _output_head_kernel,
        out_shape=jax.ShapeDtypeStruct((Bp, Op), jnp.float32),
        in_specs=[_full_spec(a) for a in (h, rd, w_oh, w_or, b_o)],
        out_specs=pl.BlockSpec((Bp, Op), lambda: (0, 0)),
    )(h, rd, w_oh, w_or, b_o)


@jax.jit
def fused_controller_step(xr, rd, h, c, w_in, w_h, b, w_oh, w_or, b_o):
    Bp, H = h.shape
    Op = w_oh.shape[1]
    return pl.pallas_call(
        _fused_step_kernel,
        out_shape=(jax.ShapeDtypeStruct((Bp, H), jnp.float32),
                   jax.ShapeDtypeStruct((Bp, H), jnp.float32),
                   jax.ShapeDtypeStruct((Bp, Op), jnp.float32)),
        in_specs=[_full_spec(a) for a in
                  (xr, rd, h, c, w_in, w_h, b, w_oh, w_or, b_o)],
        out_specs=(pl.BlockSpec((Bp, H), lambda: (0, 0)),
                   pl.BlockSpec((Bp, H), lambda: (0, 0)),
                   pl.BlockSpec((Bp, Op), lambda: (0, 0))),
        input_output_aliases={2: 0, 3: 1},   # h, c updated in place
    )(xr, rd, h, c, w_in, w_h, b, w_oh, w_or, b_o)


@jax.jit
def controller_sequence(xr_seq, rd_seq, h0, c0, w_in, w_h, b, w_oh, w_or, b_o):
    """Fused time loop: grid=(T,), resident weights, streamed inputs/outputs."""
    T, Bp, DM = xr_seq.shape
    M = rd_seq.shape[2]
    H = h0.shape[1]
    Op = w_oh.shape[1]

    in_specs = [
        pl.BlockSpec((None, Bp, DM), lambda t: (t, 0, 0)),   # x_t / prev reads
        pl.BlockSpec((None, Bp, M), lambda t: (t, 0, 0)),    # read_data_t
        pl.BlockSpec((Bp, H), lambda t: (0, 0)),             # h0 (resident)
        pl.BlockSpec((Bp, H), lambda t: (0, 0)),             # c0 (resident)
        pl.BlockSpec(w_in.shape, lambda t: (0, 0)),          # resident weights
        pl.BlockSpec(w_h.shape, lambda t: (0, 0)),
        pl.BlockSpec(b.shape, lambda t: (0, 0)),
        pl.BlockSpec(w_oh.shape, lambda t: (0, 0)),
        pl.BlockSpec(w_or.shape, lambda t: (0, 0)),
        pl.BlockSpec(b_o.shape, lambda t: (0, 0)),
    ]
    out_specs = (
        pl.BlockSpec((Bp, H), lambda t: (0, 0)),             # h (resident state)
        pl.BlockSpec((Bp, H), lambda t: (0, 0)),             # c (resident state)
        pl.BlockSpec((None, Bp, Op), lambda t: (t, 0, 0)),   # per-step output
    )
    return pl.pallas_call(
        _sequence_kernel,
        out_shape=(jax.ShapeDtypeStruct((Bp, H), jnp.float32),
                   jax.ShapeDtypeStruct((Bp, H), jnp.float32),
                   jax.ShapeDtypeStruct((T, Bp, Op), jnp.float32)),
        grid=(T,),
        in_specs=in_specs,
        out_specs=out_specs,
        compiler_params=pltpu.CompilerParams(
            dimension_semantics=("arbitrary",)),   # T is a recurrence
    )(xr_seq, rd_seq, h0, c0, w_in, w_h, b, w_oh, w_or, b_o)


# ----------------------------------------------------------------------------
# Controller (plain-Python state holder; hot paths run in the Pallas kernels)
# ----------------------------------------------------------------------------
class Controller:
    def __init__(self, input_size, controller_size, output_size,
                 read_data_size, key):
        self.num_inputs = input_size             # LSTM input dim (data + reads)
        self.controller_size = controller_size
        self.num_outputs = output_size
        self.read_data_size = read_data_size

        H = controller_size
        O = output_size
        M = read_data_size - controller_size     # total width of read vectors
        D = input_size - M                       # raw input_data width
        self.read_size = M
        self.data_size = D
        Gp = _round_up(4 * H, 128)               # packed gate lanes (=4H for H=32)
        Op = _round_up(O, 128)                   # output lanes padded to 128
        self.Gp, self.Op = Gp, Op

        ks = jax.random.split(key, 8)
        # torch.nn.LSTMCell init: U(-1/sqrt(H), 1/sqrt(H)); gate order (i,f,g,o).
        bound = 1.0 / float(H) ** 0.5
        w_ih = jax.random.uniform(ks[0], (input_size, 4 * H),
                                  minval=-bound, maxval=bound, dtype=jnp.float32)
        w_hh = jax.random.uniform(ks[1], (H, 4 * H),
                                  minval=-bound, maxval=bound, dtype=jnp.float32)
        b_ih = jax.random.uniform(ks[2], (4 * H,), minval=-bound, maxval=bound,
                                  dtype=jnp.float32)
        b_hh = jax.random.uniform(ks[3], (4 * H,), minval=-bound, maxval=bound,
                                  dtype=jnp.float32)
        b_gate = (b_ih + b_hh).reshape(1, 4 * H)

        # output_fc: kaiming_uniform_ (a=0) -> U(-sqrt(6/fan_in), +); bias N(0,0.01)
        kb = (6.0 / read_data_size) ** 0.5
        w_out = jax.random.uniform(ks[4], (read_data_size, O),
                                   minval=-kb, maxval=kb, dtype=jnp.float32)
        b_out = 0.01 * jax.random.normal(ks[5], (O,), dtype=jnp.float32)

        # lstm_h_fc / lstm_c_fc: Linear(1, H) applied to 0.0 -> only bias matters.
        self.h0_bias = jax.random.uniform(ks[6], (H,), minval=-1.0, maxval=1.0,
                                          dtype=jnp.float32)
        self.c0_bias = jax.random.uniform(ks[7], (H,), minval=-1.0, maxval=1.0,
                                          dtype=jnp.float32)

        # --- raw (torch gate order i,f,g,o) params for the pure-JAX reference ---
        self.w_ih_raw = w_ih                     # (input_size, 4H)
        self.w_hh_raw = w_hh                     # (H, 4H)
        self.b_raw = b_gate                      # (1, 4H)
        self.w_oh_raw = w_out[:H]                # (H, O)
        self.w_or_raw = w_out[H:]                # (M, O)
        self.b_o_raw = b_out.reshape(1, O)

        # --- kernel layout: gates packed contiguously, reordered (i,f,o,g),
        #     padded only at the tail of the 4H block to Gp lanes; output head
        #     padded to Op lanes for lane-dense stores ---
        def pack_gates(w):
            K = w.shape[0]
            w4 = w.reshape(K, 4, H)
            w_new = jnp.concatenate(
                [w4[:, 0], w4[:, 1], w4[:, 3], w4[:, 2]], axis=-1)  # i,f,o,g
            return jnp.pad(w_new, ((0, 0), (0, Gp - 4 * H)))

        self.w_in = pack_gates(w_ih)                                # (D+M, Gp)
        self.w_h = pack_gates(w_hh)                                 # (H, Gp)
        self.b_g = pack_gates(b_gate)                               # (1, Gp)
        self.w_oh = jnp.pad(self.w_oh_raw, ((0, 0), (0, Op - O)))   # (H, Op)
        self.w_or = jnp.pad(self.w_or_raw, ((0, 0), (0, Op - O)))   # (M, Op)
        self.b_o = jnp.pad(self.b_o_raw, ((0, 0), (0, Op - O)))     # (1, Op)

        self.lstm_h = None   # (Bp, H) state, batch padded to sublane tile (8)
        self.lstm_c = None
        self.reset()

    # -- state --------------------------------------------------------------
    def reset(self, batch_size=1):
        Bp = _round_up(max(batch_size, 1), 8)    # f32 sublane tile
        self.lstm_h = jnp.tile(self.h0_bias.reshape(1, -1), (Bp, 1))
        self.lstm_c = jnp.tile(self.c0_bias.reshape(1, -1), (Bp, 1))

    def _pad_batch(self, x):
        Bp = self.lstm_h.shape[0]
        B = x.shape[0]
        return x if B == Bp else jnp.pad(x, ((0, Bp - B), (0, 0)))

    @staticmethod
    def _cat(xs, axis=1):
        xs = list(xs)
        return xs[0] if len(xs) == 1 else jnp.concatenate(xs, axis=axis)

    # -- module-faithful API -------------------------------------------------
    def forward(self, input_data, prev_reads):
        B = input_data.shape[0]
        xr = self._pad_batch(self._cat([input_data] + list(prev_reads)))
        h_new, c_new = lstm_forward_step(xr, self.lstm_h, self.lstm_c,
                                         self.w_in, self.w_h, self.b_g)
        self.lstm_h, self.lstm_c = h_new, c_new
        return h_new[:B], c_new[:B]

    def output(self, read_data):
        rd = self._cat(read_data)
        B = rd.shape[0]
        out = output_head_step(self.lstm_h, self._pad_batch(rd),
                               self.w_oh, self.w_or, self.b_o)
        return out[:B, :self.num_outputs]

    # -- fused per-step path: one pallas_call = forward() + output() ---------
    def step(self, input_data, prev_reads, read_data):
        B = input_data.shape[0]
        xr = self._pad_batch(self._cat([input_data] + list(prev_reads)))
        rd = self._pad_batch(self._cat(read_data))
        h_new, c_new, out = fused_controller_step(
            xr, rd, self.lstm_h, self.lstm_c,
            self.w_in, self.w_h, self.b_g, self.w_oh, self.w_or, self.b_o)
        self.lstm_h, self.lstm_c = h_new, c_new
        return h_new[:B], c_new[:B], out[:B, :self.num_outputs]

    # -- fused sequence fast path: grid=(T,), VMEM-resident weights ----------
    def run_sequence(self, input_seq, prev_reads_seq, read_data_seq):
        """input_seq: (T, B, D); prev_reads_seq / read_data_seq: lists of
        (T, B, M_i) read streams.  Returns (outputs (T, B, O), h_T, c_T) and
        updates the internal state.  Slicing back to (B, O) happens ONCE here,
        never per timestep."""
        T, B, _ = input_seq.shape
        Bp = self.lstm_h.shape[0]
        assert B <= Bp, "call reset(batch_size=B) before run_sequence"
        xr_seq = self._cat([input_seq] + list(prev_reads_seq), axis=-1)
        rd_seq = self._cat(read_data_seq, axis=-1)
        if Bp != B:
            pad = ((0, 0), (0, Bp - B), (0, 0))
            xr_seq = jnp.pad(xr_seq, pad)
            rd_seq = jnp.pad(rd_seq, pad)
        h_f, c_f, out_seq = controller_sequence(
            xr_seq, rd_seq, self.lstm_h, self.lstm_c,
            self.w_in, self.w_h, self.b_g, self.w_oh, self.w_or, self.b_o)
        self.lstm_h, self.lstm_c = h_f, c_f
        return (out_seq[:, :B, :self.num_outputs], h_f[:B], c_f[:B])


# ----------------------------------------------------------------------------
# Pure-JAX reference for correctness checking (torch gate order i,f,g,o)
# ----------------------------------------------------------------------------
def _ref_step(x, r_prev, r_out, h, c, w_ih, w_hh, b, w_oh, w_or, b_o):
    H = h.shape[1]
    xr = jnp.concatenate([x, r_prev], axis=1)
    gates = (jnp.dot(xr, w_ih, precision="highest")
             + jnp.dot(h, w_hh, precision="highest") + b)
    i = jax.nn.sigmoid(gates[:, :H])
    f = jax.nn.sigmoid(gates[:, H:2 * H])
    g = jnp.tanh(gates[:, 2 * H:3 * H])
    o = jax.nn.sigmoid(gates[:, 3 * H:])
    c_new = f * c + i * g
    h_new = o * jnp.tanh(c_new)
    out = jax.nn.sigmoid(jnp.dot(h_new, w_oh, precision="highest")
                         + jnp.dot(r_out, w_or, precision="highest") + b_o)
    return h_new, c_new, out


if __name__ == "__main__":
    # Small shapes consistent with the module's forward:
    #   input_data: (B, 8); one read head of width M=4 -> LSTM input = 12
    #   controller_size H = 32; read_data_size = H + M = 36; output_size = 8
    #   sequence length T = 8 for the fused time-loop kernel.
    B, D_IN, M, H, OUT, T = 2, 8, 4, 32, 8, 8
    key = jax.random.PRNGKey(0)
    k_par, k_in, k_rp, k_rd = jax.random.split(key, 4)

    ctrl = Controller(input_size=D_IN + M, controller_size=H, output_size=OUT,
                      read_data_size=H + M, key=k_par)
    ctrl.reset(batch_size=B)

    x_seq = jax.random.normal(k_in, (T, B, D_IN), dtype=jnp.float32)
    rp_seq = jax.random.normal(k_rp, (T, B, M), dtype=jnp.float32)
    rd_seq = jax.random.normal(k_rd, (T, B, M), dtype=jnp.float32)

    # Capture the (unpadded) initial state for the reference.
    h0 = ctrl.lstm_h[:B]
    c0 = ctrl.lstm_c[:B]

    # --- fused sequence fast path: grid=(T,) with VMEM-resident weights ---
    out_seq, h_T, c_T = ctrl.run_sequence(x_seq, [rp_seq], [rd_seq])
    jax.block_until_ready((out_seq, h_T, c_T))

    h_ref, c_ref = h0, c0
    outs_ref = []
    for t in range(T):
        h_ref, c_ref, o_ref = _ref_step(
            x_seq[t], rp_seq[t], rd_seq[t], h_ref, c_ref,
            ctrl.w_ih_raw, ctrl.w_hh_raw, ctrl.b_raw,
            ctrl.w_oh_raw, ctrl.w_or_raw, ctrl.b_o_raw)
        outs_ref.append(o_ref)
    out_ref_seq = jnp.stack(outs_ref)

    assert out_seq.shape == (T, B, OUT)
    assert h_T.shape == (B, H) and c_T.shape == (B, H)
    assert jnp.allclose(out_seq, out_ref_seq, atol=1e-4), "sequence output mismatch"
    assert jnp.allclose(h_T, h_ref, atol=1e-4), "sequence final h mismatch"
    assert jnp.allclose(c_T, c_ref, atol=1e-4), "sequence final c mismatch"

    # Single-step reference (for the per-step paths).
    h_s0, c_s0, o_s0 = _ref_step(
        x_seq[0], rp_seq[0], rd_seq[0], h0, c0,
        ctrl.w_ih_raw, ctrl.w_hh_raw, ctrl.b_raw,
        ctrl.w_oh_raw, ctrl.w_or_raw, ctrl.b_o_raw)

    # --- fused per-step path: single pallas_call (LSTM step + output head) ---
    ctrl.reset(batch_size=B)
    h1, c1, o1 = ctrl.step(x_seq[0], [rp_seq[0]], [rd_seq[0]])
    jax.block_until_ready((h1, c1, o1))
    assert h1.shape == (B, H) and c1.shape == (B, H) and o1.shape == (B, OUT)
    assert jnp.allclose(h1, h_s0, atol=1e-4), "fused step h mismatch"
    assert jnp.allclose(c1, c_s0, atol=1e-4), "fused step c mismatch"
    assert jnp.allclose(o1, o_s0, atol=1e-4), "fused step output mismatch"

    # --- module-faithful two-call path (forward + output) ---
    ctrl.reset(batch_size=B)
    h2, c2 = ctrl.forward(x_seq[0], [rp_seq[0]])
    o2 = ctrl.output([rd_seq[0]])
    jax.block_until_ready((h2, c2, o2))
    assert jnp.allclose(h2, h_s0, atol=1e-4), "forward h mismatch"
    assert jnp.allclose(c2, c_s0, atol=1e-4), "forward c mismatch"
    assert jnp.allclose(o2, o_s0, atol=1e-4), "output mismatch"

    print("KERNEL_OK")
</pallas_src>

<mosaic_0001>
module attributes {stable_mosaic.version = 11 : i64} {
  func.func @_sequence_kernel(%arg0: i32, %arg1: memref<1x8x12xf32, #tpu.memory_space<vmem>>, %arg2: memref<1x8x4xf32, #tpu.memory_space<vmem>>, %arg3: memref<8x32xf32, #tpu.memory_space<vmem>>, %arg4: memref<8x32xf32, #tpu.memory_space<vmem>>, %arg5: memref<12x128xf32, #tpu.memory_space<vmem>>, %arg6: memref<32x128xf32, #tpu.memory_space<vmem>>, %arg7: memref<1x128xf32, #tpu.memory_space<vmem>>, %arg8: memref<32x128xf32, #tpu.memory_space<vmem>>, %arg9: memref<4x128xf32, #tpu.memory_space<vmem>>, %arg10: memref<1x128xf32, #tpu.memory_space<vmem>>, %arg11: memref<8x32xf32, #tpu.memory_space<vmem>>, %arg12: memref<8x32xf32, #tpu.memory_space<vmem>>, %arg13: memref<1x8x128xf32, #tpu.memory_space<vmem>>) attributes {dimension_semantics = [#tpu.dimension_semantics<arbitrary>], iteration_bounds = array<i64: 8>, scalar_prefetch = 0 : i64, scratch_operands = 0 : i64, tpu.core_type = #tpu.core_type<tc>, window_params = [{transform_indices = @transform_0, window_bounds = array<i64: 1, 8, 12>}, {transform_indices = @transform_1, window_bounds = array<i64: 1, 8, 4>}, {pipeline_mode = #tpu.pipeline_mode<synchronous>, transform_indices = @transform_2, window_bounds = array<i64: 8, 32>}, {pipeline_mode = #tpu.pipeline_mode<synchronous>, transform_indices = @transform_3, window_bounds = array<i64: 8, 32>}, {pipeline_mode = #tpu.pipeline_mode<synchronous>, transform_indices = @transform_4, window_bounds = array<i64: 12, 128>}, {pipeline_mode = #tpu.pipeline_mode<synchronous>, transform_indices = @transform_5, window_bounds = array<i64: 32, 128>}, {pipeline_mode = #tpu.pipeline_mode<synchronous>, transform_indices = @transform_6, window_bounds = array<i64: 1, 128>}, {pipeline_mode = #tpu.pipeline_mode<synchronous>, transform_indices = @transform_7, window_bounds = array<i64: 32, 128>}, {pipeline_mode = #tpu.pipeline_mode<synchronous>, transform_indices = @transform_8, window_bounds = array<i64: 4, 128>}, {pipeline_mode = #tpu.pipeline_mode<synchronous>, transform_indices = @transform_9, window_bounds = array<i64: 1, 128>}, {pipeline_mode = #tpu.pipeline_mode<synchronous>, transform_indices = @transform_10, window_bounds = array<i64: 8, 32>}, {pipeline_mode = #tpu.pipeline_mode<synchronous>, transform_indices = @transform_11, window_bounds = array<i64: 8, 32>}, {transform_indices = @transform_12, window_bounds = array<i64: 1, 8, 128>}]} {
    %c0_i32 = arith.constant 0 : i32
    %0 = arith.cmpi eq, %arg0, %c0_i32 : i32
    %1 = arith.extui %0 : i1 to i32
    %c0_i32_0 = arith.constant 0 : i32
    %2 = arith.cmpi ne, %1, %c0_i32_0 : i32
    scf.if %2 {
      %c0_34 = arith.constant 0 : index
      %c0_35 = arith.constant 0 : index
      %51 = vector.load %arg3[%c0_34, %c0_35] : memref<8x32xf32, #tpu.memory_space<vmem>>, vector<8x32xf32>
      %c0_36 = arith.constant 0 : index
      %c0_37 = arith.constant 0 : index
      %52 = vector.load %arg11[%c0_36, %c0_37] : memref<8x32xf32, #tpu.memory_space<vmem>>, vector<8x32xf32>
      tpu.vector_store %arg11[%c0_36, %c0_37], %51 {strides = array<i32>} : memref<8x32xf32, #tpu.memory_space<vmem>>, vector<8x32xf32>,
      %c0_38 = arith.constant 0 : index
      %c0_39 = arith.constant 0 : index
      %53 = vector.load %arg4[%c0_38, %c0_39] : memref<8x32xf32, #tpu.memory_space<vmem>>, vector<8x32xf32>
      %c0_40 = arith.constant 0 : index
      %c0_41 = arith.constant 0 : index
      %54 = vector.load %arg12[%c0_40, %c0_41] : memref<8x32xf32, #tpu.memory_space<vmem>>, vector<8x32xf32>
      tpu.vector_store %arg12[%c0_40, %c0_41], %53 {strides = array<i32>} : memref<8x32xf32, #tpu.memory_space<vmem>>, vector<8x32xf32>,
    } else {
    }
    %c0 = arith.constant 0 : index
    %c0_1 = arith.constant 0 : index
    %c0_2 = arith.constant 0 : index
    %3 = vector.load %arg1[%c0, %c0_1, %c0_2] : memref<1x8x12xf32, #tpu.memory_space<vmem>>, vector<1x8x12xf32>
    %4 = vector.shape_cast %3 : vector<1x8x12xf32> to vector<8x12xf32>
    %c0_3 = arith.constant 0 : index
    %c0_4 = arith.constant 0 : index
    %5 = vector.load %arg11[%c0_3, %c0_4] : memref<8x32xf32, #tpu.memory_space<vmem>>, vector<8x32xf32>
    %c0_5 = arith.constant 0 : index
    %c0_6 = arith.constant 0 : index
    %6 = vector.load %arg12[%c0_5, %c0_6] : memref<8x32xf32, #tpu.memory_space<vmem>>, vector<8x32xf32>
    %c0_7 = arith.constant 0 : index
    %c0_8 = arith.constant 0 : index
    %7 = vector.load %arg5[%c0_7, %c0_8] : memref<12x128xf32, #tpu.memory_space<vmem>>, vector<12x128xf32>
    %c0_9 = arith.constant 0 : index
    %c0_10 = arith.constant 0 : index
    %8 = vector.load %arg6[%c0_9, %c0_10] : memref<32x128xf32, #tpu.memory_space<vmem>>, vector<32x128xf32>
    %c0_11 = arith.constant 0 : index
    %c0_12 = arith.constant 0 : index
    %9 = vector.load %arg7[%c0_11, %c0_12] : memref<1x128xf32, #tpu.memory_space<vmem>>, vector<1x128xf32>
    %cst = arith.constant dense<0.000000e+00> : vector<8x128xf32>
    %10 = tpu.matmul %4, %7, %cst {dimension_numbers = #tpu.dot_dimension_numbers<[1], [0], [0], [1], [0, 0, 1, 1], [], []>} : vector<8x12xf32>, vector<12x128xf32>, vector<8x128xf32> -> vector<8x128xf32>
    %cst_13 = arith.constant dense<0.000000e+00> : vector<8x128xf32>
    %11 = tpu.matmul %5, %8, %cst_13 {dimension_numbers = #tpu.dot_dimension_numbers<[1], [0], [0], [1], [0, 0, 1, 1], [], []>} : vector<8x32xf32>, vector<32x128xf32>, vector<8x128xf32> -> vector<8x128xf32>
    %12 = arith.addf %10, %11 : vector<8x128xf32>
    %13 = vector.broadcast %9 : vector<1x128xf32> to vector<8x128xf32>
    %14 = arith.addf %12, %13 : vector<8x128xf32>
    %15 = vector.extract_strided_slice %14 {offsets = [0, 0], sizes = [8, 96], strides = [1, 1]} : vector<8x128xf32> to vector<8x96xf32>
    %16 = arith.negf %15 : vector<8x96xf32>
    %17 = math.exp %16 : vector<8x96xf32>
    %cst_14 = arith.constant 1.000000e+00 : f32
    %18 = vector.broadcast %cst_14 : f32 to vector<8x96xf32>
    %19 = arith.addf %18, %17 : vector<8x96xf32>
    %20 = arith.divf %18, %19 : vector<8x96xf32>
    %21 = vector.extract_strided_slice %14 {offsets = [0, 96], sizes = [8, 32], strides = [1, 1]} : vector<8x128xf32> to vector<8x32xf32>
    %22 = math.tanh %21 : vector<8x32xf32>
    %23 = vector.extract_strided_slice %20 {offsets = [0, 0], sizes = [8, 32], strides = [1, 1]} : vector<8x96xf32> to vector<8x32xf32>
    %24 = vector.extract_strided_slice %20 {offsets = [0, 32], sizes = [8, 32], strides = [1, 1]} : vector<8x96xf32> to vector<8x32xf32>
    %25 = vector.extract_strided_slice %20 {offsets = [0, 64], sizes = [8, 32], strides = [1, 1]} : vector<8x96xf32> to vector<8x32xf32>
    %26 = arith.mulf %24, %6 : vector<8x32xf32>
    %27 = arith.mulf %23, %22 : vector<8x32xf32>
    %28 = arith.addf %26, %27 : vector<8x32xf32>
    %29 = math.tanh %28 : vector<8x32xf32>
    %30 = arith.mulf %25, %29 : vector<8x32xf32>
    %c0_15 = arith.constant 0 : index
    %c0_16 = arith.constant 0 : index
    %31 = vector.load %arg11[%c0_15, %c0_16] : memref<8x32xf32, #tpu.memory_space<vmem>>, vector<8x32xf32>
    tpu.vector_store %arg11[%c0_15, %c0_16], %30 {strides = array<i32>} : memref<8x32xf32, #tpu.memory_space<vmem>>, vector<8x32xf32>,
    %c0_17 = arith.constant 0 : index
    %c0_18 = arith.constant 0 : index
    %32 = vector.load %arg12[%c0_17, %c0_18] : memref<8x32xf32, #tpu.memory_space<vmem>>, vector<8x32xf32>
    tpu.vector_store %arg12[%c0_17, %c0_18], %28 {strides = array<i32>} : memref<8x32xf32, #tpu.memory_space<vmem>>, vector<8x32xf32>,
    %c0_19 = arith.constant 0 : index
    %c0_20 = arith.constant 0 : index
    %c0_21 = arith.constant 0 : index
    %33 = vector.load %arg2[%c0_19, %c0_20, %c0_21] : memref<1x8x4xf32, #tpu.memory_space<vmem>>, vector<1x8x4xf32>
    %34 = vector.shape_cast %33 : vector<1x8x4xf32> to vector<8x4xf32>
    %c0_22 = arith.constant 0 : index
    %c0_23 = arith.constant 0 : index
    %35 = vector.load %arg8[%c0_22, %c0_23] : memref<32x128xf32, #tpu.memory_space<vmem>>, vector<32x128xf32>
    %c0_24 = arith.constant 0 : index
    %c0_25 = arith.constant 0 : index
    %36 = vector.load %arg9[%c0_24, %c0_25] : memref<4x128xf32, #tpu.memory_space<vmem>>, vector<4x128xf32>
    %c0_26 = arith.constant 0 : index
    %c0_27 = arith.constant 0 : index
    %37 = vector.load %arg10[%c0_26, %c0_27] : memref<1x128xf32, #tpu.memory_space<vmem>>, vector<1x128xf32>
    %cst_28 = arith.constant dense<0.000000e+00> : vector<8x128xf32>
    %38 = tpu.matmul %30, %35, %cst_28 {dimension_numbers = #tpu.dot_dimension_numbers<[1], [0], [0], [1], [0, 0, 1, 1], [], []>} : vector<8x32xf32>, vector<32x128xf32>, vector<8x128xf32> -> vector<8x128xf32>
    %cst_29 = arith.constant dense<0.000000e+00> : vector<8x128xf32>
    %39 = tpu.matmul %34, %36, %cst_29 {dimension_numbers = #tpu.dot_dimension_numbers<[1], [0], [0], [1], [0, 0, 1, 1], [], []>} : vector<8x4xf32>, vector<4x128xf32>, vector<8x128xf32> -> vector<8x128xf32>
    %40 = arith.addf %38, %39 : vector<8x128xf32>
    %41 = vector.broadcast %37 : vector<1x128xf32> to vector<8x128xf32>
    %42 = arith.addf %40, %41 : vector<8x128xf32>
    %43 = arith.negf %42 : vector<8x128xf32>
    %44 = math.exp %43 : vector<8x128xf32>
    %cst_30 = arith.constant 1.000000e+00 : f32
    %45 = vector.broadcast %cst_30 : f32 to vector<8x128xf32>
    %46 = arith.addf %45, %44 : vector<8x128xf32>
    %47 = arith.divf %45, %46 : vector<8x128xf32>
    %c0_31 = arith.constant 0 : index
    %c0_32 = arith.constant 0 : index
    %c0_33 = arith.constant 0 : index
    %48 = vector.load %arg13[%c0_31, %c0_32, %c0_33] : memref<1x8x128xf32, #tpu.memory_space<vmem>>, vector<1x8x128xf32>
    %49 = vector.shape_cast %48 : vector<1x8x128xf32> to vector<8x128xf32>
    %50 = vector.shape_cast %47 : vector<8x128xf32> to vector<1x8x128xf32>
    tpu.vector_store %arg13[%c0_31, %c0_32, %c0_33], %50 {strides = array<i32>} : memref<1x8x128xf32, #tpu.memory_space<vmem>>, vector<1x8x128xf32>,
    return
  }
  func.func @transform_0(%arg0: i32) -> (i32, i32, i32) {
    %c0_i32 = arith.constant 0 : i32
    %c0_i32_0 = arith.constant 0 : i32
    %c0_i32_1 = arith.constant 0 : i32
    return %arg0, %c0_i32, %c0_i32_0 : i32, i32, i32
  }
  func.func @transform_1(%arg0: i32) -> (i32, i32, i32) {
    %c0_i32 = arith.constant 0 : i32
    %c0_i32_0 = arith.constant 0 : i32
    %c0_i32_1 = arith.constant 0 : i32
    return %arg0, %c0_i32, %c0_i32_0 : i32, i32, i32
  }
  func.func @transform_2(%arg0: i32) -> (i32, i32) {
    %c0_i32 = arith.constant 0 : i32
    %c0_i32_0 = arith.constant 0 : i32
    %c0_i32_1 = arith.constant 0 : i32
    return %c0_i32, %c0_i32_0 : i32, i32
  }
  func.func @transform_3(%arg0: i32) -> (i32, i32) {
    %c0_i32 = arith.constant 0 : i32
    %c0_i32_0 = arith.constant 0 : i32
    %c0_i32_1 = arith.constant 0 : i32
    return %c0_i32, %c0_i32_0 : i32, i32
  }
  func.func @transform_4(%arg0: i32) -> (i32, i32) {
    %c0_i32 = arith.constant 0 : i32
    %c0_i32_0 = arith.constant 0 : i32
    %c0_i32_1 = arith.constant 0 : i32
    return %c0_i32, %c0_i32_0 : i32, i32
  }
  func.func @transform_5(%arg0: i32) -> (i32, i32) {
    %c0_i32 = arith.constant 0 : i32
    %c0_i32_0 = arith.constant 0 : i32
    %c0_i32_1 = arith.constant 0 : i32
    return %c0_i32, %c0_i32_0 : i32, i32
  }
  func.func @transform_6(%arg0: i32) -> (i32, i32) {
    %c0_i32 = arith.constant 0 : i32
    %c0_i32_0 = arith.constant 0 : i32
    %c0_i32_1 = arith.constant 0 : i32
    return %c0_i32, %c0_i32_0 : i32, i32
  }
  func.func @transform_7(%arg0: i32) -> (i32, i32) {
    %c0_i32 = arith.constant 0 : i32
    %c0_i32_0 = arith.constant 0 : i32
    %c0_i32_1 = arith.constant 0 : i32
    return %c0_i32, %c0_i32_0 : i32, i32
  }
  func.func @transform_8(%arg0: i32) -> (i32, i32) {
    %c0_i32 = arith.constant 0 : i32
    %c0_i32_0 = arith.constant 0 : i32
    %c0_i32_1 = arith.constant 0 : i32
    return %c0_i32, %c0_i32_0 : i32, i32
  }
  func.func @transform_9(%arg0: i32) -> (i32, i32) {
    %c0_i32 = arith.constant 0 : i32
    %c0_i32_0 = arith.constant 0 : i32
    %c0_i32_1 = arith.constant 0 : i32
    return %c0_i32, %c0_i32_0 : i32, i32
  }
  func.func @transform_10(%arg0: i32) -> (i32, i32) {
    %c0_i32 = arith.constant 0 : i32
    %c0_i32_0 = arith.constant 0 : i32
    %c0_i32_1 = arith.constant 0 : i32
    return %c0_i32, %c0_i32_0 : i32, i32
  }
  func.func @transform_11(%arg0: i32) -> (i32, i32) {
    %c0_i32 = arith.constant 0 : i32
    %c0_i32_0 = arith.constant 0 : i32
    %c0_i32_1 = arith.constant 0 : i32
    return %c0_i32, %c0_i32_0 : i32, i32
  }
  func.func @transform_12(%arg0: i32) -> (i32, i32, i32) {
    %c0_i32 = arith.constant 0 : i32
    %c0_i32_0 = arith.constant 0 : i32
    %c0_i32_1 = arith.constant 0 : i32
    return %arg0, %c0_i32, %c0_i32_0 : i32, i32, i32
  }
}

</mosaic_0001>

<llo_original>
// kernel: controller_sequence.1
$region0: #{controller_sequence.1}
  #allocation0 [shape = 'u32[]', space=smem, size = 0x4, offset = 0x4, fixed_abs, tag = 'smem constant byte address 0x4 - core index']
  #allocation1 [shape = 'u32[144,128]{1,0:T(1,128)}', space=vmem, size = 0x12000, scoped, tag = 'internal scratch']
  %s0 = inlined_call_operand.vmem [shape: f32[8,8,12], index: 0, kind: input, shape index: {}]
  %s1 = inlined_call_operand.vmem [shape: f32[8,8,4], index: 1, kind: input, shape index: {}]
  %s2 = inlined_call_operand.hbm [shape: f32[8,32], index: 2, kind: input, shape index: {}]
  %s3 = inlined_call_operand.vmem [shape: f32[8,32], index: 3, kind: input, shape index: {}]
  %s4 = inlined_call_operand.hbm [shape: f32[12,128], index: 4, kind: input, shape index: {}]
  %s5 = inlined_call_operand.vmem [shape: f32[32,128], index: 5, kind: input, shape index: {}]
  %s6 = inlined_call_operand.vmem [shape: f32[1,128], index: 6, kind: input, shape index: {}]
  %s7 = inlined_call_operand.hbm [shape: f32[32,128], index: 7, kind: input, shape index: {}]
  %s8 = inlined_call_operand.vmem [shape: f32[4,128], index: 8, kind: input, shape index: {}]
  %s9 = inlined_call_operand.vmem [shape: f32[1,128], index: 9, kind: input, shape index: {}]
  %s10 = inlined_call_operand.hbm [shape: f32[8,32], index: 10, kind: output, shape index: {0}]
  %s11 = inlined_call_operand.hbm [shape: f32[8,32], index: 11, kind: output, shape index: {1}]
  %s12 = inlined_call_operand.hbm [shape: f32[8,8,128], index: 12, kind: output, shape index: {2}]
  %13 = xla_tuple %s10, %s11, %s12
  %s14 = sld [smem:[#allocation0]]
  $region105: #{controller_sequence.1} parent=0
    _
  %s16 = ssub.s32 1, %s14
  %s17 = scalar_select 0, %s16, %s14
  $region1: #{controller_sequence.1} parent=0
    #allocation2 [shape = 'u8[4096]{0}', space=vmem, size = 0x1000, scoped, tag = 'input window, operand 2, single buffered']
    #allocation3 [shape = 's32[2]{0}', space=sflag, size = 0x8, scoped, tag = 'scoped memory for controller_sequence.1']
    #allocation4 [shape = 's32[2]{0}', space=sflag, size = 0x8, scoped, tag = 'scoped memory for controller_sequence.1']
    #allocation5 [shape = 'u8[8192]{0}', space=vmem, size = 0x2000, scoped, tag = 'input window, operand 4, single buffered']
    #allocation6 [shape = 's32[1]{0}', space=sflag, size = 0x4, scoped, tag = 'scoped memory for controller_sequence.1']
    #allocation7 [shape = 'u8[16384]{0}', space=vmem, size = 0x4000, scoped, tag = 'input window, operand 7, single buffered']
    #allocation8 [shape = 'u8[4096]{0}', space=vmem, size = 0x1000, scoped, tag = 'output window, operand 0, single buffered']
    #allocation9 [shape = 'u8[4096]{0}', space=vmem, size = 0x1000, scoped, tag = 'output window, operand 1, single buffered']
    #allocation10 [shape = 's32[1]{0}', space=sflag, size = 0x4, scoped, tag = 'scoped memory for controller_sequence.1']
    #allocation11 [shape = 'u8[8192]{0}', space=vmem, size = 0x2000, scoped, tag = 'output window, operand 2']
    %18 = vsyncpa [#allocation3], 0
    %19 = vsyncpa [#allocation6], 0
    %20 = vsyncpa [#allocation4], 0
    %21 = vsyncpa [#allocation10], 0
    loop: start=0, step=1, limit=10
    $region2: #{controller_sequence.1} parent=1 // loop_pre_header
      _
    $region3: #{controller_sequence.1} parent=1 // loop_header
      %s23 = sphi 0, %s27
      %p24 = scmp.ge.s32.totalorder %s23, 10
      %s33 = sphi 0, %s35
      %s36 = sphi 0, %s33
      %s37 = sphi 0, %s36
      %s53 = sphi 0, %s37
      %s59 = sphi 0, %s61
      %s62 = sphi 0, %s59
      %s63 = sphi 0, %s62
      %s79 = sphi 0, %s63
      %s83 = sphi 0, %s83
      %s85 = sphi 0, %s83
      %s86 = sphi 0, %s85
      %s100 = sphi 0, %s86
      %s104 = sphi 0, %s104
      %s106 = sphi 0, %s104
      %s107 = sphi 0, %s106
      %s121 = sphi 0, %s107
      %s125 = sphi 0, %s125
      %s127 = sphi 0, %s125
      %s128 = sphi 0, %s127
      %s142 = sphi 0, %s128
      %s146 = sphi 0, %s146
      %s148 = sphi 0, %s146
      %s149 = sphi 0, %s148
      %s163 = sphi 0, %s149
      %s167 = sphi 0, %s167
      %s169 = sphi 0, %s167
      %s170 = sphi 0, %s169
      %s184 = sphi 0, %s170
      %s188 = sphi 0, %s188
      %s190 = sphi 0, %s188
      %s191 = sphi 0, %s190
      %s205 = sphi 0, %s191
      %s209 = sphi 0, %s209
      %s211 = sphi 0, %s209
      %s212 = sphi 0, %s211
      %s226 = sphi 0, %s212
      %s230 = sphi 0, %s230
      %s232 = sphi 0, %s230
      %s233 = sphi 0, %s232
      %s247 = sphi 0, %s233
      %s251 = sphi 0, %s251
      %s253 = sphi 0, %s251
      %s254 = sphi 0, %s253
      %s268 = sphi 0, %s254
      %s272 = sphi 0, %s272
      %s274 = sphi 0, %s272
      %s275 = sphi 0, %s274
      %s289 = sphi 0, %s275
      %s295 = sphi 0, %s297
      %s298 = sphi 0, %s295
      %s299 = sphi 0, %s298
      %s315 = sphi 0, %s299
    $region4: #{controller_sequence.1} parent=1 // loop_header_branch
      %26 = sbr.rel (%p24) target = $region8
    $region5: #{controller_sequence.1} parent=1 // loop_body
      %s28 = ssub.s32 %s23, 1
      %s29 = ssub.s32 %s23, 2
      %s30 = sadd.s32 %s23, 1
      %s31 = ssub.s32 %s23, %s30
      %p32 = scmp.eq.s32.totalorder %s31, 0
      %s34 = sadd.s32 %s33, 1
      %s35 = scalar_select %p32, %s33, %s34
      %p38 = pneg %p32
      %p39 = scmp.eq.s32.totalorder %s23, 7
      %p40 = por %p38, %p39
      %p41 = scmp.ne.s32.totalorder %s33, %s36
      %p42 = scmp.eq.s32.totalorder %s23, 0
      %p43 = por %p41, %p42
      %p44 = scmp.ne.s32.totalorder %s33, %s36
      %p45 = scmp.eq.s32.totalorder %s28, 7
      %p46 = por %p44, %p45
      %p47 = scmp.ne.s32.totalorder %s36, %s37
      %p48 = scmp.eq.s32.totalorder %s28, 0
      %p49 = por %p47, %p48
      %p50 = scmp.ne.s32.totalorder %s36, %s37
      %p51 = scmp.eq.s32.totalorder %s29, 7
      %p52 = por %p50, %p51
      %p54 = scmp.ne.s32.totalorder %s37, %s53
      %p55 = scmp.eq.s32.totalorder %s29, 0
      %p56 = por %p54, %p55
      %s57 = ssub.s32 %s23, %s30
      %p58 = scmp.eq.s32.totalorder %s57, 0
      %s60 = sadd.s32 %s59, 1
      %s61 = scalar_select %p58, %s59, %s60
      %p64 = pneg %p58
      %p65 = scmp.eq.s32.totalorder %s23, 7
      %p66 = por %p64, %p65
      %p67 = scmp.ne.s32.totalorder %s59, %s62
      %p68 = scmp.eq.s32.totalorder %s23, 0
      %p69 = por %p67, %p68
      %p70 = scmp.ne.s32.totalorder %s59, %s62
      %p71 = scmp.eq.s32.totalorder %s28, 7
      %p72 = por %p70, %p71
      %p73 = scmp.ne.s32.totalorder %s62, %s63
      %p74 = scmp.eq.s32.totalorder %s28, 0
      %p75 = por %p73, %p74
      %p76 = scmp.ne.s32.totalorder %s62, %s63
      %p77 = scmp.eq.s32.totalorder %s29, 7
      %p78 = por %p76, %p77
      %p80 = scmp.ne.s32.totalorder %s63, %s79
      %p81 = scmp.eq.s32.totalorder %s29, 0
      %p82 = por %p80, %p81
      %s84 = sadd.s32 %s83, 1
      %p87 = scmp.eq.s32.totalorder %s23, 7
      %p88 = scmp.ne.s32.totalorder %s83, %s85
      %p89 = scmp.eq.s32.totalorder %s23, 0
      %p90 = por %p88, %p89
      %p91 = scmp.ne.s32.totalorder %s83, %s85
      %p92 = scmp.eq.s32.totalorder %s28, 7
      %p93 = por %p91, %p92
      %p94 = scmp.ne.s32.totalorder %s85, %s86
      %p95 = scmp.eq.s32.totalorder %s28, 0
      %p96 = por %p94, %p95
      %p97 = scmp.ne.s32.totalorder %s85, %s86
      %p98 = scmp.eq.s32.totalorder %s29, 7
      %p99 = por %p97, %p98
      %p101 = scmp.ne.s32.totalorder %s86, %s100
      %p102 = scmp.eq.s32.totalorder %s29, 0
      %p103 = por %p101, %p102
      %s105 = sadd.s32 %s104, 1
      %p108 = scmp.eq.s32.totalorder %s23, 7
      %p109 = scmp.ne.s32.totalorder %s104, %s106
      %p110 = scmp.eq.s32.totalorder %s23, 0
      %p111 = por %p109, %p110
      %p112 = scmp.ne.s32.totalorder %s104, %s106
      %p113 = scmp.eq.s32.totalorder %s28, 7
      %p114 = por %p112, %p113
      %p115 = scmp.ne.s32.totalorder %s106, %s107
      %p116 = scmp.eq.s32.totalorder %s28, 0
      %p117 = por %p115, %p116
      %p118 = scmp.ne.s32.totalorder %s106, %s107
      %p119 = scmp.eq.s32.totalorder %s29, 7
      %p120 = por %p118, %p119
      %p122 = scmp.ne.s32.totalorder %s107, %s121
      %p123 = scmp.eq.s32.totalorder %s29, 0
      %p124 = por %p122, %p123
      %s126 = sadd.s32 %s125, 1
      %p129 = scmp.eq.s32.totalorder %s23, 7
      %p130 = scmp.ne.s32.totalorder %s125, %s127
      %p131 = scmp.eq.s32.totalorder %s23, 0
      %p132 = por %p130, %p131
      %p133 = scmp.ne.s32.totalorder %s125, %s127
      %p134 = scmp.eq.s32.totalorder %s28, 7
      %p135 = por %p133, %p134
      %p136 = scmp.ne.s32.totalorder %s127, %s128
      %p137 = scmp.eq.s32.totalorder %s28, 0
      %p138 = por %p136, %p137
      %p139 = scmp.ne.s32.totalorder %s127, %s128
      %p140 = scmp.eq.s32.totalorder %s29, 7
      %p141 = por %p139, %p140
      %p143 = scmp.ne.s32.totalorder %s128, %s142
      %p144 = scmp.eq.s32.totalorder %s29, 0
      %p145 = por %p143, %p144
      %s147 = sadd.s32 %s146, 1
      %p150 = scmp.eq.s32.totalorder %s23, 7
      %p151 = scmp.ne.s32.totalorder %s146, %s148
      %p152 = scmp.eq.s32.totalorder %s23, 0
      %p153 = por %p151, %p152
      %p154 = scmp.ne.s32.totalorder %s146, %s148
      %p155 = scmp.eq.s32.totalorder %s28, 7
      %p156 = por %p154, %p155
      %p157 = scmp.ne.s32.totalorder %s148, %s149
      %p158 = scmp.eq.s32.totalorder %s28, 0
      %p159 = por %p157, %p158
      %p160 = scmp.ne.s32.totalorder %s148, %s149
      %p161 = scmp.eq.s32.totalorder %s29, 7
      %p162 = por %p160, %p161
      %p164 = scmp.ne.s32.totalorder %s149, %s163
      %p165 = scmp.eq.s32.totalorder %s29, 0
      %p166 = por %p164, %p165
      %s168 = sadd.s32 %s167, 1
      %p171 = scmp.eq.s32.totalorder %s23, 7
      %p172 = scmp.ne.s32.totalorder %s167, %s169
      %p173 = scmp.eq.s32.totalorder %s23, 0
      %p174 = por %p172, %p173
      %p175 = scmp.ne.s32.totalorder %s167, %s169
      %p176 = scmp.eq.s32.totalorder %s28, 7
      %p177 = por %p175, %p176
      %p178 = scmp.ne.s32.totalorder %s169, %s170
      %p179 = scmp.eq.s32.totalorder %s28, 0
      %p180 = por %p178, %p179
      %p181 = scmp.ne.s32.totalorder %s169, %s170
      %p182 = scmp.eq.s32.totalorder %s29, 7
      %p183 = por %p181, %p182
      %p185 = scmp.ne.s32.totalorder %s170, %s184
      %p186 = scmp.eq.s32.totalorder %s29, 0
      %p187 = por %p185, %p186
      %s189 = sadd.s32 %s188, 1
      %p192 = scmp.eq.s32.totalorder %s23, 7
      %p193 = scmp.ne.s32.totalorder %s188, %s190
      %p194 = scmp.eq.s32.totalorder %s23, 0
      %p195 = por %p193, %p194
      %p196 = scmp.ne.s32.totalorder %s188, %s190
      %p197 = scmp.eq.s32.totalorder %s28, 7
      %p198 = por %p196, %p197
      %p199 = scmp.ne.s32.totalorder %s190, %s191
      %p200 = scmp.eq.s32.totalorder %s28, 0
      %p201 = por %p199, %p200
      %p202 = scmp.ne.s32.totalorder %s190, %s191
      %p203 = scmp.eq.s32.totalorder %s29, 7
      %p204 = por %p202, %p203
      %p206 = scmp.ne.s32.totalorder %s191, %s205
      %p207 = scmp.eq.s32.totalorder %s29, 0
      %p208 = por %p206, %p207
      %s210 = sadd.s32 %s209, 1
      %p213 = scmp.eq.s32.totalorder %s23, 7
      %p214 = scmp.ne.s32.totalorder %s209, %s211
      %p215 = scmp.eq.s32.totalorder %s23, 0
      %p216 = por %p214, %p215
      %p217 = scmp.ne.s32.totalorder %s209, %s211
      %p218 = scmp.eq.s32.totalorder %s28, 7
      %p219 = por %p217, %p218
      %p220 = scmp.ne.s32.totalorder %s211, %s212
      %p221 = scmp.eq.s32.totalorder %s28, 0
      %p222 = por %p220, %p221
      %p223 = scmp.ne.s32.totalorder %s211, %s212
      %p224 = scmp.eq.s32.totalorder %s29, 7
      %p225 = por %p223, %p224
      %p227 = scmp.ne.s32.totalorder %s212, %s226
      %p228 = scmp.eq.s32.totalorder %s29, 0
      %p229 = por %p227, %p228
      %s231 = sadd.s32 %s230, 1
      %p234 = scmp.eq.s32.totalorder %s23, 7
      %p235 = scmp.ne.s32.totalorder %s230, %s232
      %p236 = scmp.eq.s32.totalorder %s23, 0
      %p237 = por %p235, %p236
      %p238 = scmp.ne.s32.totalorder %s230, %s232
      %p239 = scmp.eq.s32.totalorder %s28, 7
      %p240 = por %p238, %p239
      %p241 = scmp.ne.s32.totalorder %s232, %s233
      %p242 = scmp.eq.s32.totalorder %s28, 0
      %p243 = por %p241, %p242
      %p244 = scmp.ne.s32.totalorder %s232, %s233
      %p245 = scmp.eq.s32.totalorder %s29, 7
      %p246 = por %p244, %p245
      %p248 = scmp.ne.s32.totalorder %s233, %s247
      %p249 = scmp.eq.s32.totalorder %s29, 0
      %p250 = por %p248, %p249
      %s252 = sadd.s32 %s251, 1
      %p255 = scmp.eq.s32.totalorder %s23, 7
      %p256 = scmp.ne.s32.totalorder %s251, %s253
      %p257 = scmp.eq.s32.totalorder %s23, 0
      %p258 = por %p256, %p257
      %p259 = scmp.ne.s32.totalorder %s251, %s253
      %p260 = scmp.eq.s32.totalorder %s28, 7
      %p261 = por %p259, %p260
      %p262 = scmp.ne.s32.totalorder %s253, %s254
      %p263 = scmp.eq.s32.totalorder %s28, 0
      %p264 = por %p262, %p263
      %p265 = scmp.ne.s32.totalorder %s253, %s254
      %p266 = scmp.eq.s32.totalorder %s29, 7
      %p267 = por %p265, %p266
      %p269 = scmp.ne.s32.totalorder %s254, %s268
      %p270 = scmp.eq.s32.totalorder %s29, 0
      %p271 = por %p269, %p270
      %s273 = sadd.s32 %s272, 1
      %p276 = scmp.eq.s32.totalorder %s23, 7
      %p277 = scmp.ne.s32.totalorder %s272, %s274
      %p278 = scmp.eq.s32.totalorder %s23, 0
      %p279 = por %p277, %p278
      %p280 = scmp.ne.s32.totalorder %s272, %s274
      %p281 = scmp.eq.s32.totalorder %s28, 7
      %p282 = por %p280, %p281
      %p283 = scmp.ne.s32.totalorder %s274, %s275
      %p284 = scmp.eq.s32.totalorder %s28, 0
      %p285 = por %p283, %p284
      %p286 = scmp.ne.s32.totalorder %s274, %s275
      %p287 = scmp.eq.s32.totalorder %s29, 7
      %p288 = por %p286, %p287
      %p290 = scmp.ne.s32.totalorder %s275, %s289
      %p291 = scmp.eq.s32.totalorder %s29, 0
      %p292 = por %p290, %p291
      %s293 = ssub.s32 %s23, %s30
      %p294 = scmp.eq.s32.totalorder %s293, 0
      %s296 = sadd.s32 %s295, 1
      %s297 = scalar_select %p294, %s295, %s296
      %p300 = pneg %p294
      %p301 = scmp.eq.s32.totalorder %s23, 7
      %p302 = por %p300, %p301
      %p303 = scmp.ne.s32.totalorder %s295, %s298
      %p304 = scmp.eq.s32.totalorder %s23, 0
      %p305 = por %p303, %p304
      %p306 = scmp.ne.s32.totalorder %s295, %s298
      %p307 = scmp.eq.s32.totalorder %s28, 7
      %p308 = por %p306, %p307
      %p309 = scmp.ne.s32.totalorder %s298, %s299
      %p310 = scmp.eq.s32.totalorder %s28, 0
      %p311 = por %p309, %p310
      %p312 = scmp.ne.s32.totalorder %s298, %s299
      %p313 = scmp.eq.s32.totalorder %s29, 7
      %p314 = por %p312, %p313
      %p316 = scmp.ne.s32.totalorder %s299, %s315
      %p317 = scmp.eq.s32.totalorder %s29, 0
      %p318 = por %p316, %p317
      %p319 = scmp.le.s32.totalorder 1, %s23
      %p320 = scmp.lt.s32.totalorder %s23, 9
      %p321 = pnand %p319, %p320
      %p322 = pneg %p321
      // Predicated region
      $region9: #{controller_sequence.1} parent=5 // pred_check
        _
      $region10: #{controller_sequence.1} parent=5 // pred_check_branch
        %324 = sbr.rel (%p321) target = $region12
      $region11: #{controller_sequence.1} parent=5 // pred_region
        %s325 = ssub.s32 %s23, 1
        // Predicated region
        $region13: #{controller_sequence.1} parent=11 // pred_check
          %p326 = pneg %p96
        $region14: #{controller_sequence.1} parent=11 // pred_check_branch
          %328 = sbr.rel (%p326) target = $region16
        $region15: #{controller_sequence.1} parent=11 // pred_region
          %s330 = ssub.s32 128, 128
          %331 = vsyncadd [#allocation3], %s330
          %s333 = sshll.u32 [#allocation2], 4
          %s334 = int_to_ptr.vmem [resolvable:$true] %s333
          %336 = dma.hbm_to_vmem [thread:$0]  %s2, 128, %s334, [#allocation3]
        $region16: #{controller_sequence.1} parent=11 // pred_fallthru
          _
        // Predicated region
        $region17: #{controller_sequence.1} parent=11 // pred_check
          %p337 = pneg %p117
        $region18: #{controller_sequence.1} parent=11 // pred_check_branch
          %339 = sbr.rel (%p337) target = $region20
        $region19: #{controller_sequence.1} parent=11 // pred_region
          _
        $region20: #{controller_sequence.1} parent=11 // pred_fallthru
          _
        // Predicated region
        $region21: #{controller_sequence.1} parent=11 // pred_check
          %p340 = pneg %p138
        $region22: #{controller_sequence.1} parent=11 // pred_check_branch
          %342 = sbr.rel (%p340) target = $region24
        $region23: #{controller_sequence.1} parent=11 // pred_region
          %s344 = ssub.s32 256, 256
          %345 = vsyncadd [#allocation6], %s344
          %s346 = sshll.u32 [#allocation5], 4
          %s347 = int_to_ptr.vmem [resolvable:$true] %s346
          %352 = dma.hbm_to_vmem [thread:$0]  %s4, 256, %s347, [#allocation6], 128, 128, 8
        $region24: #{controller_sequence.1} parent=11 // pred_fallthru
          _
        // Predicated region
        $region25: #{controller_sequence.1} parent=11 // pred_check
          %p353 = pneg %p159
        $region26: #{controller_sequence.1} parent=11 // pred_check_branch
          %355 = sbr.rel (%p353) target = $region28
        $region27: #{controller_sequence.1} parent=11 // pred_region
          _
        $region28: #{controller_sequence.1} parent=11 // pred_fallthru
          _
        // Predicated region
        $region29: #{controller_sequence.1} parent=11 // pred_check
          %p356 = pneg %p180
        $region30: #{controller_sequence.1} parent=11 // pred_check_branch
          %358 = sbr.rel (%p356) target = $region32
        $region31: #{controller_sequence.1} parent=11 // pred_region
          _
        $region32: #{controller_sequence.1} parent=11 // pred_fallthru
          _
        // Predicated region
        $region33: #{controller_sequence.1} parent=11 // pred_check
          %p359 = pneg %p201
        $region34: #{controller_sequence.1} parent=11 // pred_check_branch
          %361 = sbr.rel (%p359) target = $region36
        $region35: #{controller_sequence.1} parent=11 // pred_region
          %s363 = ssub.s32 512, 512
          %364 = vsyncadd [#allocation6], %s363
          %s365 = sshll.u32 [#allocation7], 4
          %s366 = int_to_ptr.vmem [resolvable:$true] %s365
          %371 = dma.hbm_to_vmem [thread:$0]  %s7, 512, %s366, [#allocation6], 128, 128, 8
        $region36: #{controller_sequence.1} parent=11 // pred_fallthru
          _
        // Predicated region
        $region37: #{controller_sequence.1} parent=11 // pred_check
          %p372 = pneg %p222
        $region38: #{controller_sequence.1} parent=11 // pred_check_branch
          %374 = sbr.rel (%p372) target = $region40
        $region39: #{controller_sequence.1} parent=11 // pred_region
          _
        $region40: #{controller_sequence.1} parent=11 // pred_fallthru
          _
        // Predicated region
        $region41: #{controller_sequence.1} parent=11 // pred_check
          %p375 = pneg %p243
        $region42: #{controller_sequence.1} parent=11 // pred_check_branch
          %377 = sbr.rel (%p375) target = $region44
        $region43: #{controller_sequence.1} parent=11 // pred_region
          _
        $region44: #{controller_sequence.1} parent=11 // pred_fallthru
          _
      $region12: #{controller_sequence.1} parent=5 // pred_fallthru
        _
      %p378 = scmp.lt.s32.totalorder %s23, 8
      // Predicated region
      $region45: #{controller_sequence.1} parent=5 // pred_check
        %p379 = pneg %p378
      $region46: #{controller_sequence.1} parent=5 // pred_check_branch
        %381 = sbr.rel (%p379) target = $region48
      $region47: #{controller_sequence.1} parent=5 // pred_region
        // Predicated region
        $region49: #{controller_sequence.1} parent=47 // pred_check
          %p382 = pneg %p43
        $region50: #{controller_sequence.1} parent=47 // pred_check_branch
          %384 = sbr.rel (%p382) target = $region52
        $region51: #{controller_sequence.1} parent=47 // pred_region
          %p385 = scmp.lt.s32.totalorder %s23, 7
          %s386 = scalar_select %p385, %s23, 7
          %s387 = smul.addr %s386, 8
          %s388 = scalar_lea.vmem %s0, %s387
        $region52: #{controller_sequence.1} parent=47 // pred_fallthru
          _
        // Predicated region
        $region53: #{controller_sequence.1} parent=47 // pred_check
          %p389 = pneg %p69
        $region54: #{controller_sequence.1} parent=47 // pred_check_branch
          %391 = sbr.rel (%p389) target = $region56
        $region55: #{controller_sequence.1} parent=47 // pred_region
          %p392 = scmp.lt.s32.totalorder %s23, 7
          %s393 = scalar_select %p392, %s23, 7
          %s394 = smul.addr %s393, 8
          %s395 = scalar_lea.vmem %s1, %s394
        $region56: #{controller_sequence.1} parent=47 // pred_fallthru
          _
      $region48: #{controller_sequence.1} parent=5 // pred_fallthru
        _
      %p396 = scmp.le.s32.totalorder 1, %s23
      %p397 = scmp.lt.s32.totalorder %s23, 9
      %p398 = pnand %p396, %p397
      %p399 = pneg %p398
      // Predicated region
      $region57: #{controller_sequence.1} parent=5 // pred_check
        _
      $region58: #{controller_sequence.1} parent=5 // pred_check_branch
        %401 = sbr.rel (%p398) target = $region60
      $region59: #{controller_sequence.1} parent=5 // pred_region
        %s402 = ssub.s32 %s23, 1
        // Predicated region
        $region61: #{controller_sequence.1} parent=59 // pred_check
          %p403 = pneg %p96
        $region62: #{controller_sequence.1} parent=59 // pred_check_branch
          %405 = sbr.rel (%p403) target = $region64
        $region63: #{controller_sequence.1} parent=59 // pred_region
          %406 = dma.done [#allocation3], 128
        $region64: #{controller_sequence.1} parent=59 // pred_fallthru
          _
        // Predicated region
        $region65: #{controller_sequence.1} parent=59 // pred_check
          %p407 = pneg %p138
        $region66: #{controller_sequence.1} parent=59 // pred_check_branch
          %409 = sbr.rel (%p407) target = $region68
        $region67: #{controller_sequence.1} parent=59 // pred_region
          %410 = dma.done [#allocation6], 256
        $region68: #{controller_sequence.1} parent=59 // pred_fallthru
          _
        // Predicated region
        $region69: #{controller_sequence.1} parent=59 // pred_check
          %p411 = pneg %p201
        $region70: #{controller_sequence.1} parent=59 // pred_check_branch
          %413 = sbr.rel (%p411) target = $region72
        $region71: #{controller_sequence.1} parent=59 // pred_region
          %414 = dma.done [#allocation6], 512
        $region72: #{controller_sequence.1} parent=59 // pred_fallthru
          _
        %p415 = scmp.lt.s32.totalorder %s28, 7
        %s416 = scalar_select %p415, %s28, 7
        %s417 = smul.addr %s416, 8
        %s418 = scalar_lea.vmem %s0, %s417
        %p419 = pneg %p49
        %p420 = pneg %p46
        %p421 = scmp.lt.s32.totalorder %s28, 7
        %s422 = scalar_select %p421, %s28, 7
        %s423 = smul.addr %s422, 8
        %s424 = scalar_lea.vmem %s1, %s423
        %p425 = pneg %p75
        %p426 = pneg %p72
        %p427 = pneg %p96
        %p428 = pneg %p93
        %p429 = pneg %p117
        %p430 = pneg %p114
        %p431 = pneg %p138
        %p432 = pneg %p135
        %p433 = pneg %p159
        %p434 = pneg %p156
        %p435 = pneg %p180
        %p436 = pneg %p177
        %p437 = pneg %p201
        %p438 = pneg %p198
        %p439 = pneg %p222
        %p440 = pneg %p219
        %p441 = pneg %p243
        %p442 = pneg %p240
        %p443 = pneg %p264
        %p444 = pneg %p261
        %p445 = pneg %p285
        %p446 = pneg %p282
        %p447 = pneg %p311
        %p448 = pneg %p308
        %s449 = sand.u32 %s28, 1
        %s450 = scalar_lea.sflag [#allocation4], %s449
        %s451 = sand.u32 %s298, 1
        %s452 = smul.addr %s451, 8
        %s453 = scalar_lea.vmem [#allocation11], %s452
        %p454 = scmp.lt.s32.totalorder %s28, 7
        %s455 = scalar_select %p454, %s28, 7
        %s456 = smul.addr %s455, 8
        %s457 = scalar_lea.vmem %s0, %s456
        %p458 = scmp.lt.s32.totalorder %s28, 7
        %s459 = scalar_select %p458, %s28, 7
        %s460 = smul.addr %s459, 8
        %s461 = scalar_lea.vmem %s1, %s460
        %p462 = scmp.eq.s32.totalorder %s28, 0
        // Predicated region
        $region73: #{controller_sequence.1} parent=59 // pred_check
          %p463 = pneg %p462
        $region74: #{controller_sequence.1} parent=59 // pred_check_branch
          %465 = sbr.rel (%p463) target = $region76
        $region75: #{controller_sequence.1} parent=59 // pred_region
          %v466 = vld [vmem:[#allocation2] sm:$0xff]
          %vm467 = vcmask 261120
          %468 = vst.msk [vmem:[#allocation8] sm:$0xff] %vm467, %v466
          %v469 = vld [vmem:[%s3] sm:$0xff]
          %470 = vst.msk [vmem:[#allocation9] sm:$0xff] %vm467, %v469
        $region76: #{controller_sequence.1} parent=59 // pred_fallthru
          _
        %v471 = vld [vmem:[%s457] sm:$0xff]
        %v472 = vld [vmem:[#allocation8] sm:$0xff]
        %v473 = vld [vmem:[#allocation9] sm:$0xff]
        %v474 = vld [vmem:[#allocation5] sm:$0xff]
        %v475 = vld [vmem:[#allocation5 + $0x8] sm:$0xf]
        %v476 = vld [vmem:[%s5] sm:$0xff]
        %v477 = vld [vmem:[%s5 + $0x8] sm:$0xff]
        %v478 = vld [vmem:[%s5 + $0x10] sm:$0xff]
        %v479 = vld [vmem:[%s5 + $0x18] sm:$0xff]
        %v480 = vld [vmem:[%s6] sm:$0x1]
        %vm481 = vcmask 261120
        %v483 = vsel %vm481, %v472, 0
        %485 = vmatprep.subr.mxu0 0.0
        %486 = vmatpush1.msra.mxu0 %v476
        %487 = vmatprep.subr.mxu0 0.0
        %488 = vmatpush1.msra.mxu0 %v477
        %489 = vmatprep.subr.mxu0 0.0
        %490 = vmatpush1.msra.mxu0 %v478
        %491 = vmatprep.subr.mxu0 0.0
        %492 = vmatpush1.msra.mxu0 %v479
        %493 = vmatprep.subr.mxu0 0.0
        %494 = vmatpush1.msra.mxu0 0.0
        %495 = vmatprep.subr.mxu0 0.0
        %496 = vmatpush1.msra.mxu0 0.0
        %497 = vmatprep.subr.mxu0 0.0
        %498 = vmatpush1.msra.mxu0 0.0
        %499 = vmatprep.subr.mxu0 0.0
        %500 = vmatpush1.msra.mxu0 0.0
        %501 = vmatprep.subr.mxu0 0.0
        %502 = vmatpush1.msra.mxu0 0.0
        %503 = vmatprep.subr.mxu0 0.0
        %504 = vmatpush1.msra.mxu0 0.0
        %505 = vmatprep.subr.mxu0 0.0
        %506 = vmatpush1.msra.mxu0 0.0
        %507 = vmatprep.subr.mxu0 0.0
        %508 = vmatpush1.msra.mxu0 0.0
        %509 = vmatprep.subr.mxu0 0.0
        %510 = vmatpush1.msra.mxu0 0.0
        %511 = vmatprep.subr.mxu0 0.0
        %512 = vmatpush1.msra.mxu0 0.0
        %513 = vmatprep.subr.mxu0 0.0
        %514 = vmatpush1.msra.mxu0 0.0
        %515 = vmatprep.subr.mxu0 0.0
        %516 = vmatpush1.msra.mxu0 0.0
        %517 = vmatprep.subr.mxu0 0.0
        %518 = vmatpush1.msra.mxu0 0.0
        %519 = vmatprep.subr.mxu0 0.0
        %520 = vmatpush1.msra.mxu0 0.0
        %521 = vmatprep.subr.mxu0 0.0
        %522 = vmatpush1.msra.mxu0 0.0
        %523 = vmatprep.subr.mxu0 0.0
        %524 = vmatpush1.msra.mxu0 0.0
        %525 = vmatprep.subr.mxu0 0.0
        %526 = vmatpush1.msra.mxu0 0.0
        %527 = vmatprep.subr.mxu0 0.0
        %528 = vmatpush1.msra.mxu0 0.0
        %529 = vmatprep.subr.mxu0 0.0
        %530 = vmatpush1.msra.mxu0 0.0
        %531 = vmatprep.subr.mxu0 0.0
        %532 = vmatpush1.msra.mxu0 0.0
        %533 = vmatprep.subr.mxu0 0.0
        %534 = vmatpush1.msra.mxu0 0.0
        %535 = vmatprep.subr.mxu0 0.0
        %536 = vmatpush1.msra.mxu0 0.0
        %537 = vmatprep.subr.mxu0 0.0
        %538 = vmatpush1.msra.mxu0 0.0
        %539 = vmatprep.subr.mxu0 0.0
        %540 = vmatpush1.msra.mxu0 0.0
        %541 = vmatprep.subr.mxu0 0.0
        %542 = vmatpush1.msra.mxu0 0.0
        %543 = vmatprep.subr.mxu0 0.0
        %544 = vmatpush1.msra.mxu0 0.0
        %545 = vmatprep.subr.mxu0 0.0
        %546 = vmatpush1.msra.mxu0 0.0
        %547 = vmatprep.subr.mxu0 0.0
        %548 = vmatpush1.msra.mxu0 0.0
        %549 = vmatprep.mubr.f32.mxu0 0.0
        %550 = vmatmul.mubr.f32.gmra.mrb[0].mxu0 %v483
        %v551 = vpop.f32.mrb[0].mxu0
        %v552 = vadd.f32 0.0, %v551
        %v553 = vpop.f32.mrb[0].mxu0
        %554 = vdwg.mxu0
        %vm555 = vcmask 97280
        %v557 = vsel %vm555, %v471, 0
        %vm559 = vcmask 1043456
        %v561 = vsel %vm559, %v475, 0
        %563 = vmatprep.subr.mxu0 0.0
        %564 = vmatpush1.msra.mxu0 %v474
        %565 = vmatprep.subr.mxu0 0.0
        %566 = vmatpush1.msra.mxu0 %v561
        %567 = vmatprep.subr.mxu0 0.0
        %568 = vmatpush1.msra.mxu0 0.0
        %569 = vmatprep.subr.mxu0 0.0
        %570 = vmatpush1.msra.mxu0 0.0
        %571 = vmatprep.subr.mxu0 0.0
        %572 = vmatpush1.msra.mxu0 0.0
        %573 = vmatprep.subr.mxu0 0.0
        %574 = vmatpush1.msra.mxu0 0.0
        %575 = vmatprep.subr.mxu0 0.0
        %576 = vmatpush1.msra.mxu0 0.0
        %577 = vmatprep.subr.mxu0 0.0
        %578 = vmatpush1.msra.mxu0 0.0
        %579 = vmatprep.subr.mxu0 0.0
        %580 = vmatpush1.msra.mxu0 0.0
        %581 = vmatprep.subr.mxu0 0.0
        %582 = vmatpush1.msra.mxu0 0.0
        %583 = vmatprep.subr.mxu0 0.0
        %584 = vmatpush1.msra.mxu0 0.0
        %585 = vmatprep.subr.mxu0 0.0
        %586 = vmatpush1.msra.mxu0 0.0
        %587 = vmatprep.subr.mxu0 0.0
        %588 = vmatpush1.msra.mxu0 0.0
        %589 = vmatprep.subr.mxu0 0.0
        %590 = vmatpush1.msra.mxu0 0.0
        %591 = vmatprep.subr.mxu0 0.0
        %592 = vmatpush1.msra.mxu0 0.0
        %593 = vmatprep.subr.mxu0 0.0
        %594 = vmatpush1.msra.mxu0 0.0
        %595 = vmatprep.subr.mxu0 0.0
        %596 = vmatpush1.msra.mxu0 0.0
        %597 = vmatprep.subr.mxu0 0.0
        %598 = vmatpush1.msra.mxu0 0.0
        %599 = vmatprep.subr.mxu0 0.0
        %600 = vmatpush1.msra.mxu0 0.0
        %601 = vmatprep.subr.mxu0 0.0
        %602 = vmatpush1.msra.mxu0 0.0
        %603 = vmatprep.subr.mxu0 0.0
        %604 = vmatpush1.msra.mxu0 0.0
        %605 = vmatprep.subr.mxu0 0.0
        %606 = vmatpush1.msra.mxu0 0.0
        %607 = vmatprep.subr.mxu0 0.0
        %608 = vmatpush1.msra.mxu0 0.0
        %609 = vmatprep.subr.mxu0 0.0
        %610 = vmatpush1.msra.mxu0 0.0
        %611 = vmatprep.subr.mxu0 0.0
        %612 = vmatpush1.msra.mxu0 0.0
        %613 = vmatprep.subr.mxu0 0.0
        %614 = vmatpush1.msra.mxu0 0.0
        %615 = vmatprep.subr.mxu0 0.0
        %616 = vmatpush1.msra.mxu0 0.0
        %617 = vmatprep.subr.mxu0 0.0
        %618 = vmatpush1.msra.mxu0 0.0
        %619 = vmatprep.subr.mxu0 0.0
        %620 = vmatpush1.msra.mxu0 0.0
        %621 = vmatprep.subr.mxu0 0.0
        %622 = vmatpush1.msra.mxu0 0.0
        %623 = vmatprep.subr.mxu0 0.0
        %624 = vmatpush1.msra.mxu0 0.0
        %625 = vmatprep.subr.mxu0 0.0
        %626 = vmatpush1.msra.mxu0 0.0
        %627 = vmatprep.mubr.f32.mxu0 0.0
        %628 = vmatmul.mubr.f32.gmra.mrb[0].mxu0 %v557
        %v629 = vpop.f32.mrb[0].mxu0
        %v630 = vadd.f32 %v552, %v629
        %v631 = vpop.f32.mrb[0].mxu0
        %632 = vdwg.mxu0
        %v634 = vlaneseq
        %v635 = vshrl.u32 %v634, 7
        %v636 = vsub.s32 0, %v635
        %v637 = vrot.slane %v480, %v636
        %v639 = vadd.f32 %v630, %v637
        %v640 = vxor.u32 %v639, 2147483648
        %v641 = vmul.f32 %v640, 1.442695
        %v642 = vpow.pop %v641
        %v643 = vadd.f32 %v642, 1.0
        %v644 = vrcp.pop %v643
        %v645 = vmul.f32 1.0, %v644
        %v646 = vtanh.pop %v639
        %648 = vrot.lane.b32.xlu0 %v473, 32
        %v649 = vpop.permute.xlu0 %648
        %v651 = vmul.f32 %v645, %v649
        %653 = vrot.lane.b32.xlu0 %v646, 32
        %v654 = vpop.permute.xlu0 %653
        %v656 = vmul.f32 %v645, %v654
        %658 = vrot.lane.b32.xlu0 %v656, 32
        %v659 = vpop.permute.xlu0 %658
        %v661 = vadd.f32 %v651, %v659
        %v662 = vtanh.pop %v661
        %664 = vrot.lane.b32.xlu0 %v662, 32
        %v665 = vpop.permute.xlu0 %664
        %v667 = vmul.f32 %v645, %v665
        %669 = vrot.lane.b32.xlu0 %v667, 64
        %v670 = vpop.permute.xlu0 %669
        %672 = vst.msk [vmem:[#allocation8] sm:$0xff] %vm481, %v670
        %674 = vrot.lane.b32.xlu0 %v661, 96
        %v675 = vpop.permute.xlu0 %674
        %677 = vst.msk [vmem:[#allocation9] sm:$0xff] %vm481, %v675
        %v678 = vld [vmem:[%s461] sm:$0xff]
        %v679 = vld [vmem:[#allocation7] sm:$0xff]
        %v680 = vld [vmem:[#allocation7 + $0x8] sm:$0xff]
        %v681 = vld [vmem:[#allocation7 + $0x10] sm:$0xff]
        %v682 = vld [vmem:[#allocation7 + $0x18] sm:$0xff]
        %v683 = vld [vmem:[%s8] sm:$0xf]
        %v684 = vld [vmem:[%s9] sm:$0x1]
        %vm685 = vcmask 31744
        %v687 = vsel %vm685, %v678, 0
        %v690 = vsel %vm559, %v683, 0
        %692 = vmatprep.subr.mxu0 0.0
        %693 = vmatpush1.msra.mxu0 %v690
        %694 = vmatprep.subr.mxu0 0.0
        %695 = vmatpush1.msra.mxu0 0.0
        %696 = vmatprep.subr.mxu0 0.0
        %697 = vmatpush1.msra.mxu0 0.0
        %698 = vmatprep.subr.mxu0 0.0
        %699 = vmatpush1.msra.mxu0 0.0
        %700 = vmatprep.subr.mxu0 0.0
        %701 = vmatpush1.msra.mxu0 0.0
        %702 = vmatprep.subr.mxu0 0.0
        %703 = vmatpush1.msra.mxu0 0.0
        %704 = vmatprep.subr.mxu0 0.0
        %705 = vmatpush1.msra.mxu0 0.0
        %706 = vmatprep.subr.mxu0 0.0
        %707 = vmatpush1.msra.mxu0 0.0
        %708 = vmatprep.subr.mxu0 0.0
        %709 = vmatpush1.msra.mxu0 0.0
        %710 = vmatprep.subr.mxu0 0.0
        %711 = vmatpush1.msra.mxu0 0.0
        %712 = vmatprep.subr.mxu0 0.0
        %713 = vmatpush1.msra.mxu0 0.0
        %714 = vmatprep.subr.mxu0 0.0
        %715 = vmatpush1.msra.mxu0 0.0
        %716 = vmatprep.subr.mxu0 0.0
        %717 = vmatpush1.msra.mxu0 0.0
        %718 = vmatprep.subr.mxu0 0.0
        %719 = vmatpush1.msra.mxu0 0.0
        %720 = vmatprep.subr.mxu0 0.0
        %721 = vmatpush1.msra.mxu0 0.0
        %722 = vmatprep.subr.mxu0 0.0
        %723 = vmatpush1.msra.mxu0 0.0
        %724 = vmatprep.subr.mxu0 0.0
        %725 = vmatpush1.msra.mxu0 0.0
        %726 = vmatprep.subr.mxu0 0.0
        %727 = vmatpush1.msra.mxu0 0.0
        %728 = vmatprep.subr.mxu0 0.0
        %729 = vmatpush1.msra.mxu0 0.0
        %730 = vmatprep.subr.mxu0 0.0
        %731 = vmatpush1.msra.mxu0 0.0
        %732 = vmatprep.subr.mxu0 0.0
        %733 = vmatpush1.msra.mxu0 0.0
        %734 = vmatprep.subr.mxu0 0.0
        %735 = vmatpush1.msra.mxu0 0.0
        %736 = vmatprep.subr.mxu0 0.0
        %737 = vmatpush1.msra.mxu0 0.0
        %738 = vmatprep.subr.mxu0 0.0
        %739 = vmatpush1.msra.mxu0 0.0
        %740 = vmatprep.subr.mxu0 0.0
        %741 = vmatpush1.msra.mxu0 0.0
        %742 = vmatprep.subr.mxu0 0.0
        %743 = vmatpush1.msra.mxu0 0.0
        %744 = vmatprep.subr.mxu0 0.0
        %745 = vmatpush1.msra.mxu0 0.0
        %746 = vmatprep.subr.mxu0 0.0
        %747 = vmatpush1.msra.mxu0 0.0
        %748 = vmatprep.subr.mxu0 0.0
        %749 = vmatpush1.msra.mxu0 0.0
        %750 = vmatprep.subr.mxu0 0.0
        %751 = vmatpush1.msra.mxu0 0.0
        %752 = vmatprep.subr.mxu0 0.0
        %753 = vmatpush1.msra.mxu0 0.0
        %754 = vmatprep.subr.mxu0 0.0
        %755 = vmatpush1.msra.mxu0 0.0
        %756 = vmatprep.mubr.f32.mxu0 0.0
        %757 = vmatmul.mubr.f32.gmra.mrb[0].mxu0 %v687
        %v758 = vpop.f32.mrb[0].mxu0
        %v759 = vadd.f32 0.0, %v758
        %v760 = vpop.f32.mrb[0].mxu0
        %761 = vdwg.mxu0
        %v762 = vsel %vm481, %v670, 0
        %764 = vmatprep.subr.mxu0 0.0
        %765 = vmatpush1.msra.mxu0 %v679
        %766 = vmatprep.subr.mxu0 0.0
        %767 = vmatpush1.msra.mxu0 %v680
        %768 = vmatprep.subr.mxu0 0.0
        %769 = vmatpush1.msra.mxu0 %v681
        %770 = vmatprep.subr.mxu0 0.0
        %771 = vmatpush1.msra.mxu0 %v682
        %772 = vmatprep.subr.mxu0 0.0
        %773 = vmatpush1.msra.mxu0 0.0
        %774 = vmatprep.subr.mxu0 0.0
        %775 = vmatpush1.msra.mxu0 0.0
        %776 = vmatprep.subr.mxu0 0.0
        %777 = vmatpush1.msra.mxu0 0.0
        %778 = vmatprep.subr.mxu0 0.0
        %779 = vmatpush1.msra.mxu0 0.0
        %780 = vmatprep.subr.mxu0 0.0
        %781 = vmatpush1.msra.mxu0 0.0
        %782 = vmatprep.subr.mxu0 0.0
        %783 = vmatpush1.msra.mxu0 0.0
        %784 = vmatprep.subr.mxu0 0.0
        %785 = vmatpush1.msra.mxu0 0.0
        %786 = vmatprep.subr.mxu0 0.0
        %787 = vmatpush1.msra.mxu0 0.0
        %788 = vmatprep.subr.mxu0 0.0
        %789 = vmatpush1.msra.mxu0 0.0
        %790 = vmatprep.subr.mxu0 0.0
        %791 = vmatpush1.msra.mxu0 0.0
        %792 = vmatprep.subr.mxu0 0.0
        %793 = vmatpush1.msra.mxu0 0.0
        %794 = vmatprep.subr.mxu0 0.0
        %795 = vmatpush1.msra.mxu0 0.0
        %796 = vmatprep.subr.mxu0 0.0
        %797 = vmatpush1.msra.mxu0 0.0
        %798 = vmatprep.subr.mxu0 0.0
        %799 = vmatpush1.msra.mxu0 0.0
        %800 = vmatprep.subr.mxu0 0.0
        %801 = vmatpush1.msra.mxu0 0.0
        %802 = vmatprep.subr.mxu0 0.0
        %803 = vmatpush1.msra.mxu0 0.0
        %804 = vmatprep.subr.mxu0 0.0
        %805 = vmatpush1.msra.mxu0 0.0
        %806 = vmatprep.subr.mxu0 0.0
        %807 = vmatpush1.msra.mxu0 0.0
        %808 = vmatprep.subr.mxu0 0.0
        %809 = vmatpush1.msra.mxu0 0.0
        %810 = vmatprep.subr.mxu0 0.0
        %811 = vmatpush1.msra.mxu0 0.0
        %812 = vmatprep.subr.mxu0 0.0
        %813 = vmatpush1.msra.mxu0 0.0
        %814 = vmatprep.subr.mxu0 0.0
        %815 = vmatpush1.msra.mxu0 0.0
        %816 = vmatprep.subr.mxu0 0.0
        %817 = vmatpush1.msra.mxu0 0.0
        %818 = vmatprep.subr.mxu0 0.0
        %819 = vmatpush1.msra.mxu0 0.0
        %820 = vmatprep.subr.mxu0 0.0
        %821 = vmatpush1.msra.mxu0 0.0
        %822 = vmatprep.subr.mxu0 0.0
        %823 = vmatpush1.msra.mxu0 0.0
        %824 = vmatprep.subr.mxu0 0.0
        %825 = vmatpush1.msra.mxu0 0.0
        %826 = vmatprep.subr.mxu0 0.0
        %827 = vmatpush1.msra.mxu0 0.0
        %828 = vmatprep.mubr.f32.mxu0 0.0
        %829 = vmatmul.mubr.f32.gmra.mrb[0].mxu0 %v762
        %v830 = vpop.f32.mrb[0].mxu0
        %v831 = vadd.f32 %v759, %v830
        %v832 = vpop.f32.mrb[0].mxu0
        %833 = vdwg.mxu0
        %v835 = vlaneseq
        %v836 = vshrl.u32 %v835, 7
        %v837 = vsub.s32 0, %v836
        %v838 = vrot.slane %v684, %v837
        %v840 = vadd.f32 %v831, %v838
        %v841 = vxor.u32 %v840, 2147483648
        %v842 = vmul.f32 %v841, 1.442695
        %v843 = vpow.pop %v842
        %v844 = vadd.f32 %v843, 1.0
        %v845 = vrcp.pop %v844
        %v846 = vmul.f32 1.0, %v845
        %847 = vst [vmem:[%s453] sm:$0xff] %v846
        %s848 = sand.u32 %s28, 1
        %s849 = scalar_lea.sflag [#allocation4], %s848
        %s850 = sand.u32 %s298, 1
        %s851 = smul.addr %s850, 8
        %s852 = scalar_lea.vmem [#allocation11], %s851
        // Predicated region
        $region77: #{controller_sequence.1} parent=59 // pred_check
          %p853 = pneg %p261
        $region78: #{controller_sequence.1} parent=59 // pred_check_branch
          %855 = sbr.rel (%p853) target = $region80
        $region79: #{controller_sequence.1} parent=59 // pred_region
          %s857 = ssub.s32 128, 128
          %858 = vsyncadd [#allocation4], %s857
          %s860 = sshll.u32 [#allocation8], 4
          %s861 = int_to_ptr.vmem [resolvable:$true] %s860
          %863 = dma.vmem_to_hbm [thread:$0]  %s861, 128, %s10, [#allocation4]
        $region80: #{controller_sequence.1} parent=59 // pred_fallthru
          _
        // Predicated region
        $region81: #{controller_sequence.1} parent=59 // pred_check
          %p864 = pneg %p282
        $region82: #{controller_sequence.1} parent=59 // pred_check_branch
          %866 = sbr.rel (%p864) target = $region84
        $region83: #{controller_sequence.1} parent=59 // pred_region
          %s868 = ssub.s32 128, 128
          %869 = vsyncadd [#allocation10], %s868
          %s871 = sshll.u32 [#allocation9], 4
          %s872 = int_to_ptr.vmem [resolvable:$true] %s871
          %874 = dma.vmem_to_hbm [thread:$0]  %s872, 128, %s11, [#allocation10]
        $region84: #{controller_sequence.1} parent=59 // pred_fallthru
          _
        // Predicated region
        $region85: #{controller_sequence.1} parent=59 // pred_check
          %p875 = pneg %p308
        $region86: #{controller_sequence.1} parent=59 // pred_check_branch
          %877 = sbr.rel (%p875) target = $region88
        $region87: #{controller_sequence.1} parent=59 // pred_region
          %s879 = ssub.s32 128, 128
          %880 = vsyncadd %s849, %s879
          %s881 = smul.addr %s28, 128
          %s882 = scalar_lea.hbm %s12, %s881
          %s884 = sshll.u32 %s852, 4
          %s885 = int_to_ptr.vmem [resolvable:$true] %s884
          %887 = dma.vmem_to_hbm [thread:$0]  %s885, 128, %s882, %s849
        $region88: #{controller_sequence.1} parent=59 // pred_fallthru
          _
        // Predicated region
        $region89: #{controller_sequence.1} parent=59 // pred_check
          %p888 = pneg %p261
        $region90: #{controller_sequence.1} parent=59 // pred_check_branch
          %890 = sbr.rel (%p888) target = $region92
        $region91: #{controller_sequence.1} parent=59 // pred_region
          %891 = dma.done [#allocation4], 128
        $region92: #{controller_sequence.1} parent=59 // pred_fallthru
          _
        // Predicated region
        $region93: #{controller_sequence.1} parent=59 // pred_check
          %p892 = pneg %p282
        $region94: #{controller_sequence.1} parent=59 // pred_check_branch
          %894 = sbr.rel (%p892) target = $region96
        $region95: #{controller_sequence.1} parent=59 // pred_region
          %895 = dma.done [#allocation10], 128
        $region96: #{controller_sequence.1} parent=59 // pred_fallthru
          _
      $region60: #{controller_sequence.1} parent=5 // pred_fallthru
        _
      %p896 = scmp.le.s32.totalorder 2, %s23
      // Predicated region
      $region97: #{controller_sequence.1} parent=5 // pred_check
        %p897 = pneg %p896
      $region98: #{controller_sequence.1} parent=5 // pred_check_branch
        %899 = sbr.rel (%p897) target = $region100
      $region99: #{controller_sequence.1} parent=5 // pred_region
        %s900 = ssub.s32 %s23, 2
        // Predicated region
        $region101: #{controller_sequence.1} parent=99 // pred_check
          %p901 = pneg %p314
        $region102: #{controller_sequence.1} parent=99 // pred_check_branch
          %903 = sbr.rel (%p901) target = $region104
        $region103: #{controller_sequence.1} parent=99 // pred_region
          %s904 = sand.u32 %s29, 1
          %s905 = scalar_lea.sflag [#allocation4], %s904
          %s906 = sand.u32 %s299, 1
          %s907 = smul.addr %s906, 8
          %s908 = scalar_lea.vmem [#allocation11], %s907
          %909 = dma.done %s905, 128
        $region104: #{controller_sequence.1} parent=99 // pred_fallthru
          _
      $region100: #{controller_sequence.1} parent=5 // pred_fallthru
        _
    $region6: #{controller_sequence.1} parent=1 // loop_footer
      %s27 = sadd.s32 1, %s23
    $region7: #{controller_sequence.1} parent=1 // loop_footer_branch
      %22 = sbr.rel target = $region3
    $region8: #{controller_sequence.1} parent=1 // loop_exit
      _
    %910 = vsyncpa [#allocation3], 1
    %s911 = scalar_lea.sflag [#allocation3], 1
    %912 = vsyncpa %s911, 1
    %913 = vsyncpa [#allocation6], 1
    %914 = vsyncpa [#allocation4], 1
    %s915 = scalar_lea.sflag [#allocation4], 1
    %916 = vsyncpa %s915, 1
    %917 = vsyncpa [#allocation10], 1

</llo_original>
